<compile_context>
chip_gen: v7x
topology: tpu7x:2x2x1
jax: 0.10.0
libtpu: 0.0.40
codegen_flags: <defaults>
</compile_context>

<pallas_src>
import jax
import jax.numpy as jnp
from jax.experimental import pallas as pl
from jax.experimental.pallas import tpu as pltpu


def _cdiv(a, b):
    return -(-a // b)


def _round_up(a, b):
    return _cdiv(a, b) * b


def _strain_to_stress_kernel(c_ref, e_ref, o_ref):
    """Per-voxel 6x6 matrix @ 6-vector contraction.

    c_ref: (1, 6, 6, TV)  -- C[b, r, c, v]
    e_ref: (1, 6, TV)     -- strain[b, c, v]
    o_ref: (1, 6, TV)     -- stress[b, r, v] = sum_c C[b, r, c, v] * strain[b, c, v]
    """
    e = e_ref[0, :, :].astype(jnp.float32)                   # (6, TV), loaded once
    for r in range(6):                                        # static, unrolled
        c_slab = c_ref[0, r, :, :].astype(jnp.float32)        # (6, TV), contiguous slab
        row = jnp.sum(c_slab * e, axis=0, keepdims=True)      # (1, TV), XLU sublane reduce
        o_ref[0, pl.ds(r, 1), :] = row.astype(o_ref.dtype)


def _choose_voxel_tile(V, B, tile_v):
    """Voxel tile size: multiple of 128, capped at tile_v; no wrapper padding needed."""
    tv = min(_round_up(V, 128), _round_up(tile_v, 128))
    # v7x has 2 TensorCores: if the parallel grid would otherwise be a single program,
    # split the voxel axis so both cores get work.  Costs only one extra ~0.35 µs
    # pipeline step on 1-TC chips (v5e/v6e).
    if B == 1 and _cdiv(V, tv) == 1 and tv % 256 == 0:
        tv //= 2
    return tv


def strain_to_stress_pallas(C_field, strain, *, tile_v=32768):
    """Pallas TPU implementation of
    stress = einsum('brcxyz,bcxyz->brxyz', C_field, strain)."""
    B, R, Cc, X, Y, Z = C_field.shape
    assert (R, Cc) == (6, 6), "C_field must be (B, 6, 6, X, Y, Z)"
    assert strain.shape == (B, 6, X, Y, Z)
    V = X * Y * Z
    out_dtype = jnp.result_type(C_field.dtype, strain.dtype)

    # Free reshapes only (no transpose, no pad): spatial axes -> single lane axis V.
    C_flat = C_field.reshape(B, 6, 6, V)
    e_flat = strain.reshape(B, 6, V)

    tv = _choose_voxel_tile(V, B, tile_v)
    grid = (B, _cdiv(V, tv))

    ic = jnp.dtype(C_field.dtype).itemsize
    ie = jnp.dtype(strain.dtype).itemsize
    io = jnp.dtype(out_dtype).itemsize

    cost = pl.CostEstimate(
        flops=2 * B * 36 * V,
        transcendentals=0,
        bytes_accessed=B * V * (36 * ic + 6 * ie + 6 * io),
    )

    # Double-buffered VMEM footprint (sublane padding 6 -> 8 included) + headroom.
    bytes_per_step = tv * (6 * 8 * ic + 8 * ie + 8 * io)
    vmem_limit = max(2 * bytes_per_step + (2 << 20), 16 << 20)
    vmem_limit = min(vmem_limit, 100 << 20)

    out_flat = pl.pallas_call(
        _strain_to_stress_kernel,
        out_shape=jax.ShapeDtypeStruct((B, 6, V), out_dtype),
        grid=grid,
        in_specs=[
            pl.BlockSpec((1, 6, 6, tv), lambda b, v: (b, 0, 0, v)),
            pl.BlockSpec((1, 6, tv), lambda b, v: (b, 0, v)),
        ],
        out_specs=pl.BlockSpec((1, 6, tv), lambda b, v: (b, 0, v)),
        compiler_params=pltpu.CompilerParams(
            dimension_semantics=("parallel", "parallel"),
            vmem_limit_bytes=int(vmem_limit),
        ),
        cost_estimate=cost,
    )(C_flat, e_flat)

    return out_flat.reshape(B, 6, X, Y, Z)


class StrainToStressBase:
    """JAX mirror of the PyTorch StrainToStress_base module (forward pass only)."""

    def __init__(self):
        # non-persistent buffers from __init__ (unused in forward)
        self.C_ref = jnp.zeros((6, 6), dtype=jnp.float32)
        self.S_ref = jnp.zeros((6, 6), dtype=jnp.float32)

    def __call__(self, C_field, strain):
        return strain_to_stress_pallas(C_field, strain)


if __name__ == "__main__":
    key = jax.random.PRNGKey(0)
    k1, k2 = jax.random.split(key)

    B, X, Y, Z = 2, 8, 8, 8
    C_field = jax.random.normal(k1, (B, 6, 6, X, Y, Z), dtype=jnp.float32)
    strain = jax.random.normal(k2, (B, 6, X, Y, Z), dtype=jnp.float32)

    model = StrainToStressBase()
    stress = jax.block_until_ready(model(C_field, strain))

    # reference (plain JAX einsum) for sanity
    ref = jnp.einsum("brcxyz,bcxyz->brxyz", C_field, strain)
    assert stress.shape == ref.shape
    assert jnp.allclose(stress, ref, atol=1e-5, rtol=1e-5), "mismatch vs einsum reference"

    print("KERNEL_OK")
</pallas_src>

<mosaic_0001>
module attributes {stable_mosaic.version = 11 : i64} {
  func.func @_strain_to_stress_kernel(%arg0: i32, %arg1: i32, %arg2: memref<1x6x6x512xf32, #tpu.memory_space<vmem>>, %arg3: memref<1x6x512xf32, #tpu.memory_space<vmem>>, %arg4: memref<1x6x512xf32, #tpu.memory_space<vmem>>) attributes {dimension_semantics = [#tpu.dimension_semantics<parallel>, #tpu.dimension_semantics<parallel>], iteration_bounds = array<i64: 2, 1>, scalar_prefetch = 0 : i64, scratch_operands = 0 : i64, tpu.core_type = #tpu.core_type<tc>, window_params = [{transform_indices = @transform_0, window_bounds = array<i64: 1, 6, 6, 512>}, {transform_indices = @transform_1, window_bounds = array<i64: 1, 6, 512>}, {transform_indices = @transform_2, window_bounds = array<i64: 1, 6, 512>}]} {
    %c0 = arith.constant 0 : index
    %c0_0 = arith.constant 0 : index
    %c0_1 = arith.constant 0 : index
    %0 = vector.load %arg3[%c0, %c0_0, %c0_1] : memref<1x6x512xf32, #tpu.memory_space<vmem>>, vector<1x6x512xf32>
    %1 = vector.shape_cast %0 : vector<1x6x512xf32> to vector<6x512xf32>
    %c0_2 = arith.constant 0 : index
    %c0_3 = arith.constant 0 : index
    %c0_4 = arith.constant 0 : index
    %c0_5 = arith.constant 0 : index
    %2 = vector.load %arg2[%c0_2, %c0_3, %c0_4, %c0_5] : memref<1x6x6x512xf32, #tpu.memory_space<vmem>>, vector<1x1x6x512xf32>
    %3 = vector.shape_cast %2 : vector<1x1x6x512xf32> to vector<6x512xf32>
    %4 = arith.mulf %3, %1 : vector<6x512xf32>
    %cst = arith.constant dense<0.000000e+00> : vector<512xf32>
    %5 = vector.multi_reduction <add>, %4, %cst [0] : vector<6x512xf32> to vector<512xf32>
    %6 = vector.shape_cast %5 : vector<512xf32> to vector<1x512xf32>
    %c0_6 = arith.constant 0 : index
    %c0_7 = arith.constant 0 : index
    %c0_8 = arith.constant 0 : index
    %7 = vector.load %arg4[%c0_6, %c0_7, %c0_8] : memref<1x6x512xf32, #tpu.memory_space<vmem>>, vector<1x1x512xf32>
    %8 = vector.shape_cast %7 : vector<1x1x512xf32> to vector<1x512xf32>
    %9 = vector.shape_cast %6 : vector<1x512xf32> to vector<1x1x512xf32>
    tpu.vector_store %arg4[%c0_6, %c0_7, %c0_8], %9 {strides = array<i32>} : memref<1x6x512xf32, #tpu.memory_space<vmem>>, vector<1x1x512xf32>,
    %c0_9 = arith.constant 0 : index
    %c1 = arith.constant 1 : index
    %c0_10 = arith.constant 0 : index
    %c0_11 = arith.constant 0 : index
    %10 = vector.load %arg2[%c0_9, %c1, %c0_10, %c0_11] : memref<1x6x6x512xf32, #tpu.memory_space<vmem>>, vector<1x1x6x512xf32>
    %11 = vector.shape_cast %10 : vector<1x1x6x512xf32> to vector<6x512xf32>
    %12 = arith.mulf %11, %1 : vector<6x512xf32>
    %cst_12 = arith.constant dense<0.000000e+00> : vector<512xf32>
    %13 = vector.multi_reduction <add>, %12, %cst_12 [0] : vector<6x512xf32> to vector<512xf32>
    %14 = vector.shape_cast %13 : vector<512xf32> to vector<1x512xf32>
    %c0_13 = arith.constant 0 : index
    %c1_14 = arith.constant 1 : index
    %c0_15 = arith.constant 0 : index
    %15 = vector.load %arg4[%c0_13, %c1_14, %c0_15] : memref<1x6x512xf32, #tpu.memory_space<vmem>>, vector<1x1x512xf32>
    %16 = vector.shape_cast %15 : vector<1x1x512xf32> to vector<1x512xf32>
    %17 = vector.shape_cast %14 : vector<1x512xf32> to vector<1x1x512xf32>
    tpu.vector_store %arg4[%c0_13, %c1_14, %c0_15], %17 {strides = array<i32>} : memref<1x6x512xf32, #tpu.memory_space<vmem>>, vector<1x1x512xf32>,
    %c0_16 = arith.constant 0 : index
    %c2 = arith.constant 2 : index
    %c0_17 = arith.constant 0 : index
    %c0_18 = arith.constant 0 : index
    %18 = vector.load %arg2[%c0_16, %c2, %c0_17, %c0_18] : memref<1x6x6x512xf32, #tpu.memory_space<vmem>>, vector<1x1x6x512xf32>
    %19 = vector.shape_cast %18 : vector<1x1x6x512xf32> to vector<6x512xf32>
    %20 = arith.mulf %19, %1 : vector<6x512xf32>
    %cst_19 = arith.constant dense<0.000000e+00> : vector<512xf32>
    %21 = vector.multi_reduction <add>, %20, %cst_19 [0] : vector<6x512xf32> to vector<512xf32>
    %22 = vector.shape_cast %21 : vector<512xf32> to vector<1x512xf32>
    %c0_20 = arith.constant 0 : index
    %c2_21 = arith.constant 2 : index
    %c0_22 = arith.constant 0 : index
    %23 = vector.load %arg4[%c0_20, %c2_21, %c0_22] : memref<1x6x512xf32, #tpu.memory_space<vmem>>, vector<1x1x512xf32>
    %24 = vector.shape_cast %23 : vector<1x1x512xf32> to vector<1x512xf32>
    %25 = vector.shape_cast %22 : vector<1x512xf32> to vector<1x1x512xf32>
    tpu.vector_store %arg4[%c0_20, %c2_21, %c0_22], %25 {strides = array<i32>} : memref<1x6x512xf32, #tpu.memory_space<vmem>>, vector<1x1x512xf32>,
    %c0_23 = arith.constant 0 : index
    %c3 = arith.constant 3 : index
    %c0_24 = arith.constant 0 : index
    %c0_25 = arith.constant 0 : index
    %26 = vector.load %arg2[%c0_23, %c3, %c0_24, %c0_25] : memref<1x6x6x512xf32, #tpu.memory_space<vmem>>, vector<1x1x6x512xf32>
    %27 = vector.shape_cast %26 : vector<1x1x6x512xf32> to vector<6x512xf32>
    %28 = arith.mulf %27, %1 : vector<6x512xf32>
    %cst_26 = arith.constant dense<0.000000e+00> : vector<512xf32>
    %29 = vector.multi_reduction <add>, %28, %cst_26 [0] : vector<6x512xf32> to vector<512xf32>
    %30 = vector.shape_cast %29 : vector<512xf32> to vector<1x512xf32>
    %c0_27 = arith.constant 0 : index
    %c3_28 = arith.constant 3 : index
    %c0_29 = arith.constant 0 : index
    %31 = vector.load %arg4[%c0_27, %c3_28, %c0_29] : memref<1x6x512xf32, #tpu.memory_space<vmem>>, vector<1x1x512xf32>
    %32 = vector.shape_cast %31 : vector<1x1x512xf32> to vector<1x512xf32>
    %33 = vector.shape_cast %30 : vector<1x512xf32> to vector<1x1x512xf32>
    tpu.vector_store %arg4[%c0_27, %c3_28, %c0_29], %33 {strides = array<i32>} : memref<1x6x512xf32, #tpu.memory_space<vmem>>, vector<1x1x512xf32>,
    %c0_30 = arith.constant 0 : index
    %c4 = arith.constant 4 : index
    %c0_31 = arith.constant 0 : index
    %c0_32 = arith.constant 0 : index
    %34 = vector.load %arg2[%c0_30, %c4, %c0_31, %c0_32] : memref<1x6x6x512xf32, #tpu.memory_space<vmem>>, vector<1x1x6x512xf32>
    %35 = vector.shape_cast %34 : vector<1x1x6x512xf32> to vector<6x512xf32>
    %36 = arith.mulf %35, %1 : vector<6x512xf32>
    %cst_33 = arith.constant dense<0.000000e+00> : vector<512xf32>
    %37 = vector.multi_reduction <add>, %36, %cst_33 [0] : vector<6x512xf32> to vector<512xf32>
    %38 = vector.shape_cast %37 : vector<512xf32> to vector<1x512xf32>
    %c0_34 = arith.constant 0 : index
    %c4_35 = arith.constant 4 : index
    %c0_36 = arith.constant 0 : index
    %39 = vector.load %arg4[%c0_34, %c4_35, %c0_36] : memref<1x6x512xf32, #tpu.memory_space<vmem>>, vector<1x1x512xf32>
    %40 = vector.shape_cast %39 : vector<1x1x512xf32> to vector<1x512xf32>
    %41 = vector.shape_cast %38 : vector<1x512xf32> to vector<1x1x512xf32>
    tpu.vector_store %arg4[%c0_34, %c4_35, %c0_36], %41 {strides = array<i32>} : memref<1x6x512xf32, #tpu.memory_space<vmem>>, vector<1x1x512xf32>,
    %c0_37 = arith.constant 0 : index
    %c5 = arith.constant 5 : index
    %c0_38 = arith.constant 0 : index
    %c0_39 = arith.constant 0 : index
    %42 = vector.load %arg2[%c0_37, %c5, %c0_38, %c0_39] : memref<1x6x6x512xf32, #tpu.memory_space<vmem>>, vector<1x1x6x512xf32>
    %43 = vector.shape_cast %42 : vector<1x1x6x512xf32> to vector<6x512xf32>
    %44 = arith.mulf %43, %1 : vector<6x512xf32>
    %cst_40 = arith.constant dense<0.000000e+00> : vector<512xf32>
    %45 = vector.multi_reduction <add>, %44, %cst_40 [0] : vector<6x512xf32> to vector<512xf32>
    %46 = vector.shape_cast %45 : vector<512xf32> to vector<1x512xf32>
    %c0_41 = arith.constant 0 : index
    %c5_42 = arith.constant 5 : index
    %c0_43 = arith.constant 0 : index
    %47 = vector.load %arg4[%c0_41, %c5_42, %c0_43] : memref<1x6x512xf32, #tpu.memory_space<vmem>>, vector<1x1x512xf32>
    %48 = vector.shape_cast %47 : vector<1x1x512xf32> to vector<1x512xf32>
    %49 = vector.shape_cast %46 : vector<1x512xf32> to vector<1x1x512xf32>
    tpu.vector_store %arg4[%c0_41, %c5_42, %c0_43], %49 {strides = array<i32>} : memref<1x6x512xf32, #tpu.memory_space<vmem>>, vector<1x1x512xf32>,
    return
  }
  func.func @transform_0(%arg0: i32, %arg1: i32) -> (i32, i32, i32, i32) {
    %c0_i32 = arith.constant 0 : i32
    %c0_i32_0 = arith.constant 0 : i32
    %c0_i32_1 = arith.constant 0 : i32
    return %arg0, %c0_i32, %c0_i32_0, %arg1 : i32, i32, i32, i32
  }
  func.func @transform_1(%arg0: i32, %arg1: i32) -> (i32, i32, i32) {
    %c0_i32 = arith.constant 0 : i32
    %c0_i32_0 = arith.constant 0 : i32
    return %arg0, %c0_i32, %arg1 : i32, i32, i32
  }
  func.func @transform_2(%arg0: i32, %arg1: i32) -> (i32, i32, i32) {
    %c0_i32 = arith.constant 0 : i32
    %c0_i32_0 = arith.constant 0 : i32
    return %arg0, %c0_i32, %arg1 : i32, i32, i32
  }
}

</mosaic_0001>

<llo_original>
// kernel: tpu_custom_call.1
$region0: #{tpu_custom_call.1}
  #allocation0 [shape = 'u32[]', space=smem, size = 0x4, offset = 0x4, fixed_abs, tag = 'smem constant byte address 0x4 - core index']
  #allocation1 [shape = 'u32[144,128]{1,0:T(1,128)}', space=vmem, size = 0x12000, scoped, tag = 'internal scratch']
  %s0 = inlined_call_operand.vmem [shape: f32[2,6,6,512], index: 0, kind: input, shape index: {}]
  %s1 = inlined_call_operand.vmem [shape: f32[2,6,512], index: 1, kind: input, shape index: {}]
  %s2 = inlined_call_operand.vmem [shape: f32[2,6,512], index: 2, kind: output, shape index: {}]
  %s3 = sld [smem:[#allocation0]]
  $region41: #{tpu_custom_call.1} parent=0
    _
  %s5 = ssub.s32 1, %s3
  %s6 = scalar_select 0, %s5, %s3
  loop: start=0, step=1, limit=4
  $region2: #{tpu_custom_call.1} parent=0 // loop_pre_header
    _
  $region3: #{tpu_custom_call.1} parent=0 // loop_header
    %s8 = sphi 0, %s12
    %p9 = scmp.ge.s32.totalorder %s8, 4
    %s15 = sphi 0, %s27
    %s16 = sphi 0, %s23
    %s17 = sphi 0, %s15
    %s18 = sphi 0, %s16
    %s19 = sphi 0, %s17
    %s20 = sphi 0, %s18
    %s32 = sphi 0, %s34
    %s35 = sphi 0, %s32
    %s36 = sphi 0, %s35
    %s52 = sphi 0, %s36
    %s60 = sphi 0, %s62
    %s63 = sphi 0, %s60
    %s64 = sphi 0, %s63
    %s80 = sphi 0, %s64
    %s88 = sphi 0, %s90
    %s91 = sphi 0, %s88
    %s92 = sphi 0, %s91
    %s108 = sphi 0, %s92
  $region4: #{tpu_custom_call.1} parent=0 // loop_header_branch
    %11 = sbr.rel (%p9) target = $region8
  $region5: #{tpu_custom_call.1} parent=0 // loop_body
    %s13 = ssub.s32 %s8, 1
    %s14 = ssub.s32 %s8, 2
    %s21 = sadd.s32 1, %s16
    %p22 = scmp.ge.s32.totalorder %s21, 1
    %s23 = scalar_select %p22, 0, %s21
    %s24 = sadd.s32 1, %s15
    %s25 = scalar_select %p22, %s24, %s15
    %p26 = scmp.ge.s32.totalorder %s25, 2
    %s27 = scalar_select %p26, 0, %s25
    %s28 = ssub.s32 %s15, %s27
    %s29 = ssub.s32 %s16, %s23
    %s30 = sor.u32 %s28, %s29
    %p31 = scmp.eq.s32.totalorder %s30, 0
    %s33 = sadd.s32 %s32, 1
    %s34 = scalar_select %p31, %s32, %s33
    %p37 = pneg %p31
    %p38 = scmp.eq.s32.totalorder %s8, 1
    %p39 = por %p37, %p38
    %p40 = scmp.ne.s32.totalorder %s32, %s35
    %p41 = scmp.eq.s32.totalorder %s8, 0
    %p42 = por %p40, %p41
    %p43 = scmp.ne.s32.totalorder %s32, %s35
    %p44 = scmp.eq.s32.totalorder %s13, 1
    %p45 = por %p43, %p44
    %p46 = scmp.ne.s32.totalorder %s35, %s36
    %p47 = scmp.eq.s32.totalorder %s13, 0
    %p48 = por %p46, %p47
    %p49 = scmp.ne.s32.totalorder %s35, %s36
    %p50 = scmp.eq.s32.totalorder %s14, 1
    %p51 = por %p49, %p50
    %p53 = scmp.ne.s32.totalorder %s36, %s52
    %p54 = scmp.eq.s32.totalorder %s14, 0
    %p55 = por %p53, %p54
    %s56 = ssub.s32 %s15, %s27
    %s57 = ssub.s32 %s16, %s23
    %s58 = sor.u32 %s56, %s57
    %p59 = scmp.eq.s32.totalorder %s58, 0
    %s61 = sadd.s32 %s60, 1
    %s62 = scalar_select %p59, %s60, %s61
    %p65 = pneg %p59
    %p66 = scmp.eq.s32.totalorder %s8, 1
    %p67 = por %p65, %p66
    %p68 = scmp.ne.s32.totalorder %s60, %s63
    %p69 = scmp.eq.s32.totalorder %s8, 0
    %p70 = por %p68, %p69
    %p71 = scmp.ne.s32.totalorder %s60, %s63
    %p72 = scmp.eq.s32.totalorder %s13, 1
    %p73 = por %p71, %p72
    %p74 = scmp.ne.s32.totalorder %s63, %s64
    %p75 = scmp.eq.s32.totalorder %s13, 0
    %p76 = por %p74, %p75
    %p77 = scmp.ne.s32.totalorder %s63, %s64
    %p78 = scmp.eq.s32.totalorder %s14, 1
    %p79 = por %p77, %p78
    %p81 = scmp.ne.s32.totalorder %s64, %s80
    %p82 = scmp.eq.s32.totalorder %s14, 0
    %p83 = por %p81, %p82
    %s84 = ssub.s32 %s15, %s27
    %s85 = ssub.s32 %s16, %s23
    %s86 = sor.u32 %s84, %s85
    %p87 = scmp.eq.s32.totalorder %s86, 0
    %s89 = sadd.s32 %s88, 1
    %s90 = scalar_select %p87, %s88, %s89
    %p93 = pneg %p87
    %p94 = scmp.eq.s32.totalorder %s8, 1
    %p95 = por %p93, %p94
    %p96 = scmp.ne.s32.totalorder %s88, %s91
    %p97 = scmp.eq.s32.totalorder %s8, 0
    %p98 = por %p96, %p97
    %p99 = scmp.ne.s32.totalorder %s88, %s91
    %p100 = scmp.eq.s32.totalorder %s13, 1
    %p101 = por %p99, %p100
    %p102 = scmp.ne.s32.totalorder %s91, %s92
    %p103 = scmp.eq.s32.totalorder %s13, 0
    %p104 = por %p102, %p103
    %p105 = scmp.ne.s32.totalorder %s91, %s92
    %p106 = scmp.eq.s32.totalorder %s14, 1
    %p107 = por %p105, %p106
    %p109 = scmp.ne.s32.totalorder %s92, %s108
    %p110 = scmp.eq.s32.totalorder %s14, 0
    %p111 = por %p109, %p110
    %p112 = scmp.le.s32.totalorder 1, %s8
    %p113 = scmp.lt.s32.totalorder %s8, 3
    %p114 = pnand %p112, %p113
    %p115 = pneg %p114
    // Predicated region
    $region9: #{tpu_custom_call.1} parent=5 // pred_check
      _
    $region10: #{tpu_custom_call.1} parent=5 // pred_check_branch
      %117 = sbr.rel (%p114) target = $region12
    $region11: #{tpu_custom_call.1} parent=5 // pred_region
      %s118 = ssub.s32 %s8, 1
    $region12: #{tpu_custom_call.1} parent=5 // pred_fallthru
      _
    %p119 = scmp.lt.s32.totalorder %s8, 2
    // Predicated region
    $region13: #{tpu_custom_call.1} parent=5 // pred_check
      %p120 = pneg %p119
    $region14: #{tpu_custom_call.1} parent=5 // pred_check_branch
      %122 = sbr.rel (%p120) target = $region16
    $region15: #{tpu_custom_call.1} parent=5 // pred_region
      // Predicated region
      $region17: #{tpu_custom_call.1} parent=15 // pred_check
        %p123 = pneg %p42
      $region18: #{tpu_custom_call.1} parent=15 // pred_check_branch
        %125 = sbr.rel (%p123) target = $region20
      $region19: #{tpu_custom_call.1} parent=15 // pred_region
        %s126 = smul.u32 4, %s16
        %p127 = scmp.lt.s32.totalorder %s15, 1
        %s128 = scalar_select %p127, %s15, 1
        %p129 = scmp.lt.s32.totalorder %s126, 3
        %s130 = scalar_select %p129, %s126, 3
        %s131 = smul.addr %s128, 24
        %s132 = sadd.s32 %s130, %s131
        %s133 = smul.addr %s132, 8
        %s134 = scalar_lea.vmem %s0, %s133
        %s135 = smul.u32 4, %s16
      $region20: #{tpu_custom_call.1} parent=15 // pred_fallthru
        _
      // Predicated region
      $region21: #{tpu_custom_call.1} parent=15 // pred_check
        %p136 = pneg %p70
      $region22: #{tpu_custom_call.1} parent=15 // pred_check_branch
        %138 = sbr.rel (%p136) target = $region24
      $region23: #{tpu_custom_call.1} parent=15 // pred_region
        %s139 = smul.u32 4, %s16
        %p140 = scmp.lt.s32.totalorder %s15, 1
        %s141 = scalar_select %p140, %s15, 1
        %p142 = scmp.lt.s32.totalorder %s139, 3
        %s143 = scalar_select %p142, %s139, 3
        %s144 = smul.addr %s141, 4
        %s145 = sadd.s32 %s143, %s144
        %s146 = smul.addr %s145, 8
        %s147 = scalar_lea.vmem %s1, %s146
        %s148 = smul.u32 4, %s16
      $region24: #{tpu_custom_call.1} parent=15 // pred_fallthru
        _
    $region16: #{tpu_custom_call.1} parent=5 // pred_fallthru
      _
    %p149 = scmp.le.s32.totalorder 1, %s8
    %p150 = scmp.lt.s32.totalorder %s8, 3
    %p151 = pnand %p149, %p150
    %p152 = pneg %p151
    // Predicated region
    $region25: #{tpu_custom_call.1} parent=5 // pred_check
      _
    $region26: #{tpu_custom_call.1} parent=5 // pred_check_branch
      %154 = sbr.rel (%p151) target = $region28
    $region27: #{tpu_custom_call.1} parent=5 // pred_region
      %s155 = ssub.s32 %s8, 1
      %s156 = smul.u32 4, %s18
      %p157 = scmp.lt.s32.totalorder %s17, 1
      %s158 = scalar_select %p157, %s17, 1
      %p159 = scmp.lt.s32.totalorder %s156, 3
      %s160 = scalar_select %p159, %s156, 3
      %s161 = smul.addr %s158, 24
      %s162 = sadd.s32 %s160, %s161
      %s163 = smul.addr %s162, 8
      %s164 = scalar_lea.vmem %s0, %s163
      %p165 = pneg %p48
      %p166 = pneg %p45
      %s167 = smul.u32 4, %s18
      %p168 = scmp.lt.s32.totalorder %s17, 1
      %s169 = scalar_select %p168, %s17, 1
      %p170 = scmp.lt.s32.totalorder %s167, 3
      %s171 = scalar_select %p170, %s167, 3
      %s172 = smul.addr %s169, 4
      %s173 = sadd.s32 %s171, %s172
      %s174 = smul.addr %s173, 8
      %s175 = scalar_lea.vmem %s1, %s174
      %p176 = pneg %p76
      %p177 = pneg %p73
      %p178 = pneg %p104
      %p179 = pneg %p101
      %s180 = smul.u32 4, %s18
      %p181 = scmp.lt.s32.totalorder %s17, 1
      %s182 = scalar_select %p181, %s17, 1
      %p183 = scmp.lt.s32.totalorder %s180, 3
      %s184 = scalar_select %p183, %s180, 3
      %s185 = smul.addr %s182, 4
      %s186 = sadd.s32 %s184, %s185
      %s187 = smul.addr %s186, 8
      %s188 = scalar_lea.vmem %s2, %s187
      %s189 = smul.u32 4, %s18
      %p190 = scmp.lt.s32.totalorder %s17, 1
      %s191 = scalar_select %p190, %s17, 1
      %p192 = scmp.lt.s32.totalorder %s189, 3
      %s193 = scalar_select %p192, %s189, 3
      %s194 = smul.addr %s191, 24
      %s195 = sadd.s32 %s193, %s194
      %s196 = smul.addr %s195, 8
      %s197 = scalar_lea.vmem %s0, %s196
      %s198 = smul.u32 4, %s18
      %s199 = smul.u32 4, %s18
      %p200 = scmp.lt.s32.totalorder %s17, 1
      %s201 = scalar_select %p200, %s17, 1
      %p202 = scmp.lt.s32.totalorder %s199, 3
      %s203 = scalar_select %p202, %s199, 3
      %s204 = smul.addr %s201, 4
      %s205 = sadd.s32 %s203, %s204
      %s206 = smul.addr %s205, 8
      %s207 = scalar_lea.vmem %s1, %s206
      %s208 = smul.u32 4, %s18
      %s209 = smul.u32 4, %s18
      %p210 = scmp.lt.s32.totalorder %s17, 1
      %s211 = scalar_select %p210, %s17, 1
      %p212 = scmp.lt.s32.totalorder %s209, 3
      %s213 = scalar_select %p212, %s209, 3
      %s214 = smul.addr %s211, 4
      %s215 = sadd.s32 %s213, %s214
      %s216 = smul.addr %s215, 8
      %s217 = scalar_lea.vmem %s2, %s216
      %s218 = smul.u32 4, %s18
      %v219 = vld [vmem:[%s207] sm:$0x3f]
      %v220 = vld [vmem:[%s207 + $0x8] sm:$0x3f]
      %v221 = vld [vmem:[%s207 + $0x10] sm:$0x3f]
      %v222 = vld [vmem:[%s207 + $0x18] sm:$0x3f]
      %v223 = vld [vmem:[%s197] sm:$0x3f]
      %v224 = vld [vmem:[%s197 + $0x8] sm:$0x3f]
      %v225 = vld [vmem:[%s197 + $0x10] sm:$0x3f]
      %v226 = vld [vmem:[%s197 + $0x18] sm:$0x3f]
      %v227 = vmul.f32 %v223, %v219
      %v228 = vmul.f32 %v224, %v220
      %v229 = vmul.f32 %v225, %v221
      %v230 = vmul.f32 %v226, %v222
      %vm231 = vcmask 1045504
      %v232 = vsel %vm231, %v227, 0.0
      %v233 = vrot.slane %v232, 4
      %v234 = vadd.f32 %v232, %v233
      %v235 = vrot.slane %v234, 2
      %v236 = vadd.f32 %v234, %v235
      %v237 = vrot.slane %v236, 1
      %v238 = vadd.f32 %v236, %v237
      %v239 = vsel %vm231, %v228, 0.0
      %v240 = vrot.slane %v239, 4
      %v241 = vadd.f32 %v239, %v240
      %v242 = vrot.slane %v241, 2
      %v243 = vadd.f32 %v241, %v242
      %v244 = vrot.slane %v243, 1
      %v245 = vadd.f32 %v243, %v244
      %v246 = vsel %vm231, %v229, 0.0
      %v247 = vrot.slane %v246, 4
      %v248 = vadd.f32 %v246, %v247
      %v249 = vrot.slane %v248, 2
      %v250 = vadd.f32 %v248, %v249
      %v251 = vrot.slane %v250, 1
      %v252 = vadd.f32 %v250, %v251
      %v253 = vsel %vm231, %v230, 0.0
      %v254 = vrot.slane %v253, 4
      %v255 = vadd.f32 %v253, %v254
      %v256 = vrot.slane %v255, 2
      %v257 = vadd.f32 %v255, %v256
      %v258 = vrot.slane %v257, 1
      %v259 = vadd.f32 %v257, %v258
      %v264 = vcombine.low %v238, %v245
      %v265 = vcombine.low %v252, %v259
      %v267 = vunpack.c.l.s4 1966171168
      %v268 = vunpack.c.0.s8 %v267
      %v269 = vlaneseq
      %v270 = vshrl.u32 %v269, 7
      %v271 = vsub.s32 %v268, %v270
      %v272 = vrot.slane %v264, %v271
      %v274 = vunpack.c.l.s4 1966171168
      %v275 = vunpack.c.0.s8 %v274
      %v276 = vlaneseq
      %v277 = vshrl.u32 %v276, 7
      %v278 = vsub.s32 %v275, %v277
      %v279 = vrot.slane %v265, %v278
      %v280 = vcombine.low %v272, %v279
      %v282 = vunpack.c.l.s4 1966171168
      %v283 = vunpack.c.0.s8 %v282
      %v284 = vlaneseq
      %v285 = vshrl.u32 %v284, 7
      %v286 = vsub.s32 %v283, %v285
      %v287 = vrot.slane %v280, %v286
      %v289 = vlaneseq
      %vm290 = vcmp.ge.s32.totalorder %v289, 0
      %vm291 = vcmp.lt.s32.totalorder %v289, 512
      %vm292 = vmand %vm290, %vm291
      %293 = vst.msk [vmem:[%s217] ss:$8 sm:$0xf] %vm292, %v287
      %294 = vst.msk [vmem:[%s217] ss:$8 sm:$0x0] %vm292, %v287
      %s295 = scalar_lea.vmem %s197, 32
      %v296 = vld [vmem:[%s295] sm:$0x3f]
      %v297 = vld [vmem:[%s295 + $0x8] sm:$0x3f]
      %v298 = vld [vmem:[%s295 + $0x10] sm:$0x3f]
      %v299 = vld [vmem:[%s295 + $0x18] sm:$0x3f]
      %v300 = vmul.f32 %v296, %v219
      %v301 = vmul.f32 %v297, %v220
      %v302 = vmul.f32 %v298, %v221
      %v303 = vmul.f32 %v299, %v222
      %v304 = vsel %vm231, %v300, 0.0
      %v305 = vrot.slane %v304, 4
      %v306 = vadd.f32 %v304, %v305
      %v307 = vrot.slane %v306, 2
      %v308 = vadd.f32 %v306, %v307
      %v309 = vrot.slane %v308, 1
      %v310 = vadd.f32 %v308, %v309
      %v311 = vsel %vm231, %v301, 0.0
      %v312 = vrot.slane %v311, 4
      %v313 = vadd.f32 %v311, %v312
      %v314 = vrot.slane %v313, 2
      %v315 = vadd.f32 %v313, %v314
      %v316 = vrot.slane %v315, 1
      %v317 = vadd.f32 %v315, %v316
      %v318 = vsel %vm231, %v302, 0.0
      %v319 = vrot.slane %v318, 4
      %v320 = vadd.f32 %v318, %v319
      %v321 = vrot.slane %v320, 2
      %v322 = vadd.f32 %v320, %v321
      %v323 = vrot.slane %v322, 1
      %v324 = vadd.f32 %v322, %v323
      %v325 = vsel %vm231, %v303, 0.0
      %v326 = vrot.slane %v325, 4
      %v327 = vadd.f32 %v325, %v326
      %v328 = vrot.slane %v327, 2
      %v329 = vadd.f32 %v327, %v328
      %v330 = vrot.slane %v329, 1
      %v331 = vadd.f32 %v329, %v330
      %v336 = vcombine.low %v310, %v317
      %v337 = vcombine.low %v324, %v331
      %v339 = vunpack.c.l.s4 1966171168
      %v340 = vunpack.c.0.s8 %v339
      %v341 = vlaneseq
      %v342 = vshrl.u32 %v341, 7
      %v343 = vsub.s32 %v340, %v342
      %v344 = vrot.slane %v336, %v343
      %v346 = vunpack.c.l.s4 1966171168
      %v347 = vunpack.c.0.s8 %v346
      %v348 = vlaneseq
      %v349 = vshrl.u32 %v348, 7
      %v350 = vsub.s32 %v347, %v349
      %v351 = vrot.slane %v337, %v350
      %v352 = vcombine.low %v344, %v351
      %v354 = vunpack.c.l.s4 1966171168
      %v355 = vunpack.c.0.s8 %v354
      %v356 = vlaneseq
      %v357 = vshrl.u32 %v356, 7
      %v358 = vsub.s32 %v355, %v357
      %v359 = vrot.slane %v352, %v358
      %s361 = scalar_lea.vmem %s217, 1
      %362 = vst.msk [vmem:[%s361] ss:$8 sm:$0xf] %vm292, %v359
      %363 = vst.msk [vmem:[%s361] ss:$8 sm:$0x0] %vm292, %v359
      %s364 = scalar_lea.vmem %s197, 64
      %v365 = vld [vmem:[%s364] sm:$0x3f]
      %v366 = vld [vmem:[%s364 + $0x8] sm:$0x3f]
      %v367 = vld [vmem:[%s364 + $0x10] sm:$0x3f]
      %v368 = vld [vmem:[%s364 + $0x18] sm:$0x3f]
      %v369 = vmul.f32 %v365, %v219
      %v370 = vmul.f32 %v366, %v220
      %v371 = vmul.f32 %v367, %v221
      %v372 = vmul.f32 %v368, %v222
      %v373 = vsel %vm231, %v369, 0.0
      %v374 = vrot.slane %v373, 4
      %v375 = vadd.f32 %v373, %v374
      %v376 = vrot.slane %v375, 2
      %v377 = vadd.f32 %v375, %v376
      %v378 = vrot.slane %v377, 1
      %v379 = vadd.f32 %v377, %v378
      %v380 = vsel %vm231, %v370, 0.0
      %v381 = vrot.slane %v380, 4
      %v382 = vadd.f32 %v380, %v381
      %v383 = vrot.slane %v382, 2
      %v384 = vadd.f32 %v382, %v383
      %v385 = vrot.slane %v384, 1
      %v386 = vadd.f32 %v384, %v385
      %v387 = vsel %vm231, %v371, 0.0
      %v388 = vrot.slane %v387, 4
      %v389 = vadd.f32 %v387, %v388
      %v390 = vrot.slane %v389, 2
      %v391 = vadd.f32 %v389, %v390
      %v392 = vrot.slane %v391, 1
      %v393 = vadd.f32 %v391, %v392
      %v394 = vsel %vm231, %v372, 0.0
      %v395 = vrot.slane %v394, 4
      %v396 = vadd.f32 %v394, %v395
      %v397 = vrot.slane %v396, 2
      %v398 = vadd.f32 %v396, %v397
      %v399 = vrot.slane %v398, 1
      %v400 = vadd.f32 %v398, %v399
      %v405 = vcombine.low %v379, %v386
      %v406 = vcombine.low %v393, %v400
      %v408 = vunpack.c.l.s4 1966171168
      %v409 = vunpack.c.0.s8 %v408
      %v410 = vlaneseq
      %v411 = vshrl.u32 %v410, 7
      %v412 = vsub.s32 %v409, %v411
      %v413 = vrot.slane %v405, %v412
      %v415 = vunpack.c.l.s4 1966171168
      %v416 = vunpack.c.0.s8 %v415
      %v417 = vlaneseq
      %v418 = vshrl.u32 %v417, 7
      %v419 = vsub.s32 %v416, %v418
      %v420 = vrot.slane %v406, %v419
      %v421 = vcombine.low %v413, %v420
      %v423 = vunpack.c.l.s4 1966171168
      %v424 = vunpack.c.0.s8 %v423
      %v425 = vlaneseq
      %v426 = vshrl.u32 %v425, 7
      %v427 = vsub.s32 %v424, %v426
      %v428 = vrot.slane %v421, %v427
      %s430 = scalar_lea.vmem %s217, 2
      %431 = vst.msk [vmem:[%s430] ss:$8 sm:$0xf] %vm292, %v428
      %432 = vst.msk [vmem:[%s430] ss:$8 sm:$0x0] %vm292, %v428
      %s433 = scalar_lea.vmem %s197, 96
      %v434 = vld [vmem:[%s433] sm:$0x3f]
      %v435 = vld [vmem:[%s433 + $0x8] sm:$0x3f]
      %v436 = vld [vmem:[%s433 + $0x10] sm:$0x3f]
      %v437 = vld [vmem:[%s433 + $0x18] sm:$0x3f]
      %v438 = vmul.f32 %v434, %v219
      %v439 = vmul.f32 %v435, %v220
      %v440 = vmul.f32 %v436, %v221
      %v441 = vmul.f32 %v437, %v222
      %v442 = vsel %vm231, %v438, 0.0
      %v443 = vrot.slane %v442, 4
      %v444 = vadd.f32 %v442, %v443
      %v445 = vrot.slane %v444, 2
      %v446 = vadd.f32 %v444, %v445
      %v447 = vrot.slane %v446, 1
      %v448 = vadd.f32 %v446, %v447
      %v449 = vsel %vm231, %v439, 0.0
      %v450 = vrot.slane %v449, 4
      %v451 = vadd.f32 %v449, %v450
      %v452 = vrot.slane %v451, 2
      %v453 = vadd.f32 %v451, %v452
      %v454 = vrot.slane %v453, 1
      %v455 = vadd.f32 %v453, %v454
      %v456 = vsel %vm231, %v440, 0.0
      %v457 = vrot.slane %v456, 4
      %v458 = vadd.f32 %v456, %v457
      %v459 = vrot.slane %v458, 2
      %v460 = vadd.f32 %v458, %v459
      %v461 = vrot.slane %v460, 1
      %v462 = vadd.f32 %v460, %v461
      %v463 = vsel %vm231, %v441, 0.0
      %v464 = vrot.slane %v463, 4
      %v465 = vadd.f32 %v463, %v464
      %v466 = vrot.slane %v465, 2
      %v467 = vadd.f32 %v465, %v466
      %v468 = vrot.slane %v467, 1
      %v469 = vadd.f32 %v467, %v468
      %v474 = vcombine.low %v448, %v455
      %v475 = vcombine.low %v462, %v469
      %v477 = vunpack.c.l.s4 1966171168
      %v478 = vunpack.c.0.s8 %v477
      %v479 = vlaneseq
      %v480 = vshrl.u32 %v479, 7
      %v481 = vsub.s32 %v478, %v480
      %v482 = vrot.slane %v474, %v481
      %v484 = vunpack.c.l.s4 1966171168
      %v485 = vunpack.c.0.s8 %v484
      %v486 = vlaneseq
      %v487 = vshrl.u32 %v486, 7
      %v488 = vsub.s32 %v485, %v487
      %v489 = vrot.slane %v475, %v488
      %v490 = vcombine.low %v482, %v489
      %v492 = vunpack.c.l.s4 1966171168
      %v493 = vunpack.c.0.s8 %v492
      %v494 = vlaneseq
      %v495 = vshrl.u32 %v494, 7
      %v496 = vsub.s32 %v493, %v495
      %v497 = vrot.slane %v490, %v496
      %s499 = scalar_lea.vmem %s217, 3
      %500 = vst.msk [vmem:[%s499] ss:$8 sm:$0xf] %vm292, %v497
      %501 = vst.msk [vmem:[%s499] ss:$8 sm:$0x0] %vm292, %v497
      %s502 = scalar_lea.vmem %s197, 128
      %v503 = vld [vmem:[%s502] sm:$0x3f]
      %v504 = vld [vmem:[%s502 + $0x8] sm:$0x3f]
      %v505 = vld [vmem:[%s502 + $0x10] sm:$0x3f]
      %v506 = vld [vmem:[%s502 + $0x18] sm:$0x3f]
      %v507 = vmul.f32 %v503, %v219
      %v508 = vmul.f32 %v504, %v220
      %v509 = vmul.f32 %v505, %v221
      %v510 = vmul.f32 %v506, %v222
      %v511 = vsel %vm231, %v507, 0.0
      %v512 = vrot.slane %v511, 4
      %v513 = vadd.f32 %v511, %v512
      %v514 = vrot.slane %v513, 2
      %v515 = vadd.f32 %v513, %v514
      %v516 = vrot.slane %v515, 1
      %v517 = vadd.f32 %v515, %v516
      %v518 = vsel %vm231, %v508, 0.0
      %v519 = vrot.slane %v518, 4
      %v520 = vadd.f32 %v518, %v519
      %v521 = vrot.slane %v520, 2
      %v522 = vadd.f32 %v520, %v521
      %v523 = vrot.slane %v522, 1
      %v524 = vadd.f32 %v522, %v523
      %v525 = vsel %vm231, %v509, 0.0
      %v526 = vrot.slane %v525, 4
      %v527 = vadd.f32 %v525, %v526
      %v528 = vrot.slane %v527, 2
      %v529 = vadd.f32 %v527, %v528
      %v530 = vrot.slane %v529, 1
      %v531 = vadd.f32 %v529, %v530
      %v532 = vsel %vm231, %v510, 0.0
      %v533 = vrot.slane %v532, 4
      %v534 = vadd.f32 %v532, %v533
      %v535 = vrot.slane %v534, 2
      %v536 = vadd.f32 %v534, %v535
      %v537 = vrot.slane %v536, 1
      %v538 = vadd.f32 %v536, %v537
      %v543 = vcombine.low %v517, %v524
      %v544 = vcombine.low %v531, %v538
      %v546 = vunpack.c.l.s4 1966171168
      %v547 = vunpack.c.0.s8 %v546
      %v548 = vlaneseq
      %v549 = vshrl.u32 %v548, 7
      %v550 = vsub.s32 %v547, %v549
      %v551 = vrot.slane %v543, %v550
      %v553 = vunpack.c.l.s4 1966171168
      %v554 = vunpack.c.0.s8 %v553
      %v555 = vlaneseq
      %v556 = vshrl.u32 %v555, 7
      %v557 = vsub.s32 %v554, %v556
      %v558 = vrot.slane %v544, %v557
      %v559 = vcombine.low %v551, %v558
      %v561 = vunpack.c.l.s4 1966171168
      %v562 = vunpack.c.0.s8 %v561
      %v563 = vlaneseq
      %v564 = vshrl.u32 %v563, 7
      %v565 = vsub.s32 %v562, %v564
      %v566 = vrot.slane %v559, %v565
      %s568 = scalar_lea.vmem %s217, 4
      %569 = vst.msk [vmem:[%s568] ss:$8 sm:$0xf] %vm292, %v566
      %570 = vst.msk [vmem:[%s568] ss:$8 sm:$0x0] %vm292, %v566
      %s571 = scalar_lea.vmem %s197, 160
      %v572 = vld [vmem:[%s571] sm:$0x3f]
      %v573 = vld [vmem:[%s571 + $0x8] sm:$0x3f]
      %v574 = vld [vmem:[%s571 + $0x10] sm:$0x3f]
      %v575 = vld [vmem:[%s571 + $0x18] sm:$0x3f]
      %v576 = vmul.f32 %v572, %v219
      %v577 = vmul.f32 %v573, %v220
      %v578 = vmul.f32 %v574, %v221
      %v579 = vmul.f32 %v575, %v222
      %v580 = vsel %vm231, %v576, 0.0
      %v581 = vrot.slane %v580, 4
      %v582 = vadd.f32 %v580, %v581
      %v583 = vrot.slane %v582, 2
      %v584 = vadd.f32 %v582, %v583
      %v585 = vrot.slane %v584, 1
      %v586 = vadd.f32 %v584, %v585
      %v587 = vsel %vm231, %v577, 0.0
      %v588 = vrot.slane %v587, 4
      %v589 = vadd.f32 %v587, %v588
      %v590 = vrot.slane %v589, 2
      %v591 = vadd.f32 %v589, %v590
      %v592 = vrot.slane %v591, 1
      %v593 = vadd.f32 %v591, %v592
      %v594 = vsel %vm231, %v578, 0.0
      %v595 = vrot.slane %v594, 4
      %v596 = vadd.f32 %v594, %v595
      %v597 = vrot.slane %v596, 2
      %v598 = vadd.f32 %v596, %v597
      %v599 = vrot.slane %v598, 1
      %v600 = vadd.f32 %v598, %v599
      %v601 = vsel %vm231, %v579, 0.0
      %v602 = vrot.slane %v601, 4
      %v603 = vadd.f32 %v601, %v602
      %v604 = vrot.slane %v603, 2
      %v605 = vadd.f32 %v603, %v604
      %v606 = vrot.slane %v605, 1
      %v607 = vadd.f32 %v605, %v606
      %v612 = vcombine.low %v586, %v593
      %v613 = vcombine.low %v600, %v607
      %v615 = vunpack.c.l.s4 1966171168
      %v616 = vunpack.c.0.s8 %v615
      %v617 = vlaneseq
      %v618 = vshrl.u32 %v617, 7
      %v619 = vsub.s32 %v616, %v618
      %v620 = vrot.slane %v612, %v619
      %v622 = vunpack.c.l.s4 1966171168
      %v623 = vunpack.c.0.s8 %v622
      %v624 = vlaneseq
      %v625 = vshrl.u32 %v624, 7
      %v626 = vsub.s32 %v623, %v625
      %v627 = vrot.slane %v613, %v626
      %v628 = vcombine.low %v620, %v627
      %v630 = vunpack.c.l.s4 1966171168
      %v631 = vunpack.c.0.s8 %v630
      %v632 = vlaneseq
      %v633 = vshrl.u32 %v632, 7
      %v634 = vsub.s32 %v631, %v633
      %v635 = vrot.slane %v628, %v634
      %s637 = scalar_lea.vmem %s217, 5
      %638 = vst.msk [vmem:[%s637] ss:$8 sm:$0xf] %vm292, %v635
      %639 = vst.msk [vmem:[%s637] ss:$8 sm:$0x0] %vm292, %v635
      %s640 = smul.u32 4, %s18
      %p641 = scmp.lt.s32.totalorder %s17, 1
      %s642 = scalar_select %p641, %s17, 1
      %p643 = scmp.lt.s32.totalorder %s640, 3
      %s644 = scalar_select %p643, %s640, 3
      %s645 = smul.addr %s642, 4
      %s646 = sadd.s32 %s644, %s645
      %s647 = smul.addr %s646, 8
      %s648 = scalar_lea.vmem %s2, %s647
      // Predicated region
      $region29: #{tpu_custom_call.1} parent=27 // pred_check
        %p649 = pneg %p101
      $region30: #{tpu_custom_call.1} parent=27 // pred_check_branch
        %651 = sbr.rel (%p649) target = $region32
      $region31: #{tpu_custom_call.1} parent=27 // pred_region
        %s652 = smul.u32 4, %s18
      $region32: #{tpu_custom_call.1} parent=27 // pred_fallthru
        _
    $region28: #{tpu_custom_call.1} parent=5 // pred_fallthru
      _
    %p653 = scmp.le.s32.totalorder 2, %s8
    // Predicated region
    $region33: #{tpu_custom_call.1} parent=5 // pred_check
      %p654 = pneg %p653
    $region34: #{tpu_custom_call.1} parent=5 // pred_check_branch
      %656 = sbr.rel (%p654) target = $region36
    $region35: #{tpu_custom_call.1} parent=5 // pred_region
      %s657 = ssub.s32 %s8, 2
      // Predicated region
      $region37: #{tpu_custom_call.1} parent=35 // pred_check
        %p658 = pneg %p107
      $region38: #{tpu_custom_call.1} parent=35 // pred_check_branch
        %660 = sbr.rel (%p658) target = $region40
      $region39: #{tpu_custom_call.1} parent=35 // pred_region
        %s661 = smul.u32 4, %s20
        %p662 = scmp.lt.s32.totalorder %s19, 1
        %s663 = scalar_select %p662, %s19, 1
        %p664 = scmp.lt.s32.totalorder %s661, 3
        %s665 = scalar_select %p664, %s661, 3
        %s666 = smul.addr %s663, 4
        %s667 = sadd.s32 %s665, %s666
        %s668 = smul.addr %s667, 8
        %s669 = scalar_lea.vmem %s2, %s668
      $region40: #{tpu_custom_call.1} parent=35 // pred_fallthru
        _
    $region36: #{tpu_custom_call.1} parent=5 // pred_fallthru
      _
  $region6: #{tpu_custom_call.1} parent=0 // loop_footer
    %s12 = sadd.s32 1, %s8
  $region7: #{tpu_custom_call.1} parent=0 // loop_footer_branch
    %7 = sbr.rel target = $region3
  $region8: #{tpu_custom_call.1} parent=0 // loop_exit
    _

</llo_original>
